<compile_context>
chip_gen: v7x
topology: tpu7x:2x2x1
jax: 0.10.0
libtpu: 0.0.40
codegen_flags: <defaults>
</compile_context>

<pallas_src>
import functools

import jax
import jax.numpy as jnp
from jax import lax
from jax.experimental import pallas as pl
from jax.experimental.pallas import tpu as pltpu


# -----------------------------------------------------------------------------
# Kernel: one grid step == Bt batch elements, whole (Bt, L, Dp) slab in VMEM.
# LayerNorm over channels + subtract per-channel sequence mean, all on-chip.
# -----------------------------------------------------------------------------
def _my_layernorm_kernel(x_ref, g_ref, b_ref, o_ref, *, eps, valid_d):
    x = x_ref[...].astype(jnp.float32)                 # (Bt, L, Dp), f32 accum
    g = g_ref[...]                                     # (1, Dp), f32
    b = b_ref[...]                                     # (1, Dp), f32
    dp = x.shape[-1]

    if valid_d == dp:
        # Lane-dense fast path (channels already a multiple of 128).
        mu = jnp.mean(x, axis=-1, keepdims=True)       # (Bt, L, 1)
        xc = x - mu
        var = jnp.mean(xc * xc, axis=-1, keepdims=True)
    else:
        # Padded lanes (>= valid_d) hold zeros; exclude them from statistics.
        inv_d = jnp.float32(1.0 / valid_d)
        mu = jnp.sum(x, axis=-1, keepdims=True) * inv_d
        xc = x - mu
        lane = lax.broadcasted_iota(jnp.int32, x.shape, x.ndim - 1)
        xc_m = jnp.where(lane < valid_d, xc, 0.0)
        var = jnp.sum(xc_m * xc_m, axis=-1, keepdims=True) * inv_d

    inv = lax.rsqrt(var + eps)                         # EUP
    # gamma/beta are zero-padded, so padded lanes of x_hat are exactly 0.
    x_hat = xc * inv * g + b                           # (Bt, L, Dp)

    # bias = mean over the sequence dim (torch dim=1), broadcast-subtract.
    seq_mean = jnp.mean(x_hat, axis=1, keepdims=True)  # (Bt, 1, Dp)
    o_ref[...] = (x_hat - seq_mean).astype(o_ref.dtype)


# -----------------------------------------------------------------------------
# Block-size selection helpers
# -----------------------------------------------------------------------------
def _default_vmem_budget():
    # Target the multi-MiB HBM-roofline sweet spot while staying safely under
    # each generation's VMEM (v5e/v6e 128 MiB phys / 16-32 MiB scoped default,
    # v7x 64 MiB phys). Conservative 12 MiB fallback fits every generation's
    # scoped default without raising limits.
    try:
        cap = int(pltpu.get_tpu_info().vmem_capacity_bytes)
        return int(min(max(cap // 4, 12 << 20), 48 << 20))
    except Exception:
        return 12 << 20


def _largest_divisor_leq(n, k):
    k = max(1, min(n, int(k)))
    while n % k:
        k -= 1
    return k


# -----------------------------------------------------------------------------
# Wrapper
# -----------------------------------------------------------------------------
def my_layernorm(x, gamma, beta, *, eps=1e-5, vmem_block_budget_bytes=None,
                 donate_input=False):
    """x: (B, L, D); gamma/beta: (D,). Returns (B, L, D) in x.dtype."""
    B, L, D = x.shape
    orig_d = D
    pad = (-D) % 128
    if pad:
        # Keep the output spec lane-dense; padded channels are masked in-kernel.
        x = jnp.pad(x, ((0, 0), (0, 0), (0, pad)))
        gamma = jnp.pad(gamma, (0, pad))
        beta = jnp.pad(beta, (0, pad))
        donate_input = False  # shapes no longer match the caller's buffer
    dp = orig_d + pad

    # Affine params stay in f32 inside the kernel (matches torch numerics even
    # for bf16 activations).
    gamma2d = gamma.reshape(1, dp).astype(jnp.float32)
    beta2d = beta.reshape(1, dp).astype(jnp.float32)

    itemsize = x.dtype.itemsize
    # Double-buffered input + output blocks per batch element.
    per_batch = 2 * L * dp * (itemsize + itemsize)

    if vmem_block_budget_bytes is None:
        vmem_block_budget_bytes = _default_vmem_budget()

    bt = _largest_divisor_leq(B, max(1, vmem_block_budget_bytes // per_batch))
    # Keep at least 2 grid steps when the problem is big enough to matter so
    # the batch axis can still shard across TensorCores (v7x megacore). Tiny
    # problems collapse into a single step (grid overhead dominates there).
    if bt == B and B >= 2 and B * per_batch > (8 << 20):
        bt = _largest_divisor_leq(B, B // 2)

    buffered = bt * per_batch + 4 * dp * 4 * 2  # + gamma/beta (negligible)
    cp_kwargs = dict(dimension_semantics=("parallel",))
    if buffered > (14 << 20):
        # Exceeds the smallest scoped-VMEM default; raise the limit explicitly.
        cp_kwargs["vmem_limit_bytes"] = int(buffered + (8 << 20))
    compiler_params = pltpu.CompilerParams(**cp_kwargs)

    call_kwargs = {}
    if donate_input:
        # Output reuses x's HBM buffer (each block is fully read before its
        # writeback in the pipeline, and x/out have identical shape+dtype).
        call_kwargs["input_output_aliases"] = {0: 0}

    kernel = functools.partial(_my_layernorm_kernel, eps=eps, valid_d=orig_d)
    out = pl.pallas_call(
        kernel,
        out_shape=jax.ShapeDtypeStruct((B, L, dp), x.dtype),
        grid=(B // bt,),
        in_specs=[
            pl.BlockSpec((bt, L, dp), lambda i: (i, 0, 0)),  # x slab
            pl.BlockSpec((1, dp), lambda i: (0, 0)),         # gamma (constant)
            pl.BlockSpec((1, dp), lambda i: (0, 0)),         # beta  (constant)
        ],
        out_specs=pl.BlockSpec((bt, L, dp), lambda i: (i, 0, 0)),
        compiler_params=compiler_params,
        **call_kwargs,
    )(x, gamma2d, beta2d)

    if pad:
        out = out[..., :orig_d]
    return out


# -----------------------------------------------------------------------------
# Pure-JAX reference (mirrors the PyTorch module exactly, f32 math)
# -----------------------------------------------------------------------------
def my_layernorm_ref(x, gamma, beta, eps=1e-5):
    x = x.astype(jnp.float32)
    mu = jnp.mean(x, axis=-1, keepdims=True)
    var = jnp.mean((x - mu) ** 2, axis=-1, keepdims=True)
    x_hat = (x - mu) / jnp.sqrt(var + eps) * gamma + beta
    bias = jnp.mean(x_hat, axis=1, keepdims=True)
    return x_hat - bias


if __name__ == "__main__":
    # Small shapes consistent with the module: (batch, seq_len, channels).
    B, L, D = 4, 16, 128
    key = jax.random.PRNGKey(0)
    kx, kg, kb = jax.random.split(key, 3)
    x = jax.random.normal(kx, (B, L, D), dtype=jnp.float32)
    gamma = 1.0 + 0.1 * jax.random.normal(kg, (D,), jnp.float32)
    beta = 0.1 * jax.random.normal(kb, (D,), jnp.float32)

    fwd = jax.jit(my_layernorm)

    # f32 path.
    out = jax.block_until_ready(fwd(x, gamma, beta))
    ref = my_layernorm_ref(x, gamma, beta)
    assert out.shape == (B, L, D)
    assert jnp.allclose(out, ref, atol=1e-5, rtol=1e-5), (
        float(jnp.max(jnp.abs(out - ref))))

    # bf16 I/O path (f32 accumulation inside the kernel).
    xb = x.astype(jnp.bfloat16)
    outb = jax.block_until_ready(fwd(xb, gamma, beta))
    refb = my_layernorm_ref(xb.astype(jnp.float32), gamma, beta)
    assert outb.dtype == jnp.bfloat16
    assert jnp.allclose(outb.astype(jnp.float32), refb, atol=5e-2, rtol=0), (
        float(jnp.max(jnp.abs(outb.astype(jnp.float32) - refb))))

    # Non-multiple-of-128 channels exercises the lane-padding guard.
    D2 = 96
    x2 = jax.random.normal(jax.random.PRNGKey(1), (2, 8, D2), jnp.float32)
    g2 = 1.0 + 0.1 * jax.random.normal(jax.random.PRNGKey(2), (D2,), jnp.float32)
    b2 = 0.1 * jax.random.normal(jax.random.PRNGKey(3), (D2,), jnp.float32)
    out2 = jax.block_until_ready(jax.jit(my_layernorm)(x2, g2, b2))
    ref2 = my_layernorm_ref(x2, g2, b2)
    assert out2.shape == (2, 8, D2)
    assert jnp.allclose(out2, ref2, atol=1e-5, rtol=1e-5), (
        float(jnp.max(jnp.abs(out2 - ref2))))

    print("KERNEL_OK")
</pallas_src>

<mosaic_0001>
module attributes {stable_mosaic.version = 11 : i64} {
  func.func @_my_layernorm_kernel(%arg0: i32, %arg1: memref<4x16x128xf32, #tpu.memory_space<vmem>>, %arg2: memref<1x128xf32, #tpu.memory_space<vmem>>, %arg3: memref<1x128xf32, #tpu.memory_space<vmem>>, %arg4: memref<4x16x128xf32, #tpu.memory_space<vmem>>) attributes {dimension_semantics = [#tpu.dimension_semantics<parallel>], iteration_bounds = array<i64: 1>, scalar_prefetch = 0 : i64, scratch_operands = 0 : i64, tpu.core_type = #tpu.core_type<tc>, window_params = [{transform_indices = @transform_0, window_bounds = array<i64: 4, 16, 128>}, {pipeline_mode = #tpu.pipeline_mode<synchronous>, transform_indices = @transform_1, window_bounds = array<i64: 1, 128>}, {pipeline_mode = #tpu.pipeline_mode<synchronous>, transform_indices = @transform_2, window_bounds = array<i64: 1, 128>}, {transform_indices = @transform_3, window_bounds = array<i64: 4, 16, 128>}]} {
    %c0 = arith.constant 0 : index
    %c0_0 = arith.constant 0 : index
    %c0_1 = arith.constant 0 : index
    %0 = vector.load %arg1[%c0, %c0_0, %c0_1] : memref<4x16x128xf32, #tpu.memory_space<vmem>>, vector<4x16x128xf32>
    %c0_2 = arith.constant 0 : index
    %c0_3 = arith.constant 0 : index
    %1 = vector.load %arg2[%c0_2, %c0_3] : memref<1x128xf32, #tpu.memory_space<vmem>>, vector<1x128xf32>
    %c0_4 = arith.constant 0 : index
    %c0_5 = arith.constant 0 : index
    %2 = vector.load %arg3[%c0_4, %c0_5] : memref<1x128xf32, #tpu.memory_space<vmem>>, vector<1x128xf32>
    %cst = arith.constant dense<0.000000e+00> : vector<4x16xf32>
    %3 = vector.multi_reduction <add>, %0, %cst [2] : vector<4x16x128xf32> to vector<4x16xf32>
    %4 = vector.shape_cast %3 : vector<4x16xf32> to vector<4x16x1xf32>
    %cst_6 = arith.constant 1.280000e+02 : f32
    %5 = vector.broadcast %cst_6 : f32 to vector<4x16x1xf32>
    %6 = arith.divf %4, %5 : vector<4x16x1xf32>
    %7 = vector.broadcast %6 : vector<4x16x1xf32> to vector<4x16x128xf32>
    %8 = arith.subf %0, %7 : vector<4x16x128xf32>
    %9 = arith.mulf %8, %8 : vector<4x16x128xf32>
    %cst_7 = arith.constant dense<0.000000e+00> : vector<4x16xf32>
    %10 = vector.multi_reduction <add>, %9, %cst_7 [2] : vector<4x16x128xf32> to vector<4x16xf32>
    %11 = vector.shape_cast %10 : vector<4x16xf32> to vector<4x16x1xf32>
    %cst_8 = arith.constant 1.280000e+02 : f32
    %12 = vector.broadcast %cst_8 : f32 to vector<4x16x1xf32>
    %13 = arith.divf %11, %12 : vector<4x16x1xf32>
    %cst_9 = arith.constant 9.99999974E-6 : f32
    %14 = vector.broadcast %cst_9 : f32 to vector<4x16x1xf32>
    %15 = arith.addf %13, %14 : vector<4x16x1xf32>
    %16 = math.rsqrt %15 : vector<4x16x1xf32>
    %17 = vector.broadcast %16 : vector<4x16x1xf32> to vector<4x16x128xf32>
    %18 = arith.mulf %8, %17 : vector<4x16x128xf32>
    %19 = vector.shape_cast %1 : vector<1x128xf32> to vector<1x1x128xf32>
    %20 = vector.broadcast %19 : vector<1x1x128xf32> to vector<4x16x128xf32>
    %21 = arith.mulf %18, %20 : vector<4x16x128xf32>
    %22 = vector.shape_cast %2 : vector<1x128xf32> to vector<1x1x128xf32>
    %23 = vector.broadcast %22 : vector<1x1x128xf32> to vector<4x16x128xf32>
    %24 = arith.addf %21, %23 : vector<4x16x128xf32>
    %cst_10 = arith.constant dense<0.000000e+00> : vector<4x128xf32>
    %25 = vector.multi_reduction <add>, %24, %cst_10 [1] : vector<4x16x128xf32> to vector<4x128xf32>
    %26 = vector.shape_cast %25 : vector<4x128xf32> to vector<4x1x128xf32>
    %cst_11 = arith.constant 1.600000e+01 : f32
    %27 = vector.broadcast %cst_11 : f32 to vector<4x1x128xf32>
    %28 = arith.divf %26, %27 : vector<4x1x128xf32>
    %29 = vector.broadcast %28 : vector<4x1x128xf32> to vector<4x16x128xf32>
    %30 = arith.subf %24, %29 : vector<4x16x128xf32>
    %c0_12 = arith.constant 0 : index
    %c0_13 = arith.constant 0 : index
    %c0_14 = arith.constant 0 : index
    %31 = vector.load %arg4[%c0_12, %c0_13, %c0_14] : memref<4x16x128xf32, #tpu.memory_space<vmem>>, vector<4x16x128xf32>
    tpu.vector_store %arg4[%c0_12, %c0_13, %c0_14], %30 {strides = array<i32>} : memref<4x16x128xf32, #tpu.memory_space<vmem>>, vector<4x16x128xf32>,
    return
  }
  func.func @transform_0(%arg0: i32) -> (i32, i32, i32) {
    %c0_i32 = arith.constant 0 : i32
    %c0_i32_0 = arith.constant 0 : i32
    %c0_i32_1 = arith.constant 0 : i32
    return %arg0, %c0_i32, %c0_i32_0 : i32, i32, i32
  }
  func.func @transform_1(%arg0: i32) -> (i32, i32) {
    %c0_i32 = arith.constant 0 : i32
    %c0_i32_0 = arith.constant 0 : i32
    %c0_i32_1 = arith.constant 0 : i32
    return %c0_i32, %c0_i32_0 : i32, i32
  }
  func.func @transform_2(%arg0: i32) -> (i32, i32) {
    %c0_i32 = arith.constant 0 : i32
    %c0_i32_0 = arith.constant 0 : i32
    %c0_i32_1 = arith.constant 0 : i32
    return %c0_i32, %c0_i32_0 : i32, i32
  }
  func.func @transform_3(%arg0: i32) -> (i32, i32, i32) {
    %c0_i32 = arith.constant 0 : i32
    %c0_i32_0 = arith.constant 0 : i32
    %c0_i32_1 = arith.constant 0 : i32
    return %arg0, %c0_i32, %c0_i32_0 : i32, i32, i32
  }
}

</mosaic_0001>

<llo_original>
// kernel: my_layernorm.1
$region0: #{my_layernorm.1}
  #allocation0 [shape = 'u32[]', space=smem, size = 0x4, offset = 0x4, fixed_abs, tag = 'smem constant byte address 0x4 - core index']
  #allocation1 [shape = 'u32[144,128]{1,0:T(1,128)}', space=vmem, size = 0x12000, scoped, tag = 'internal scratch']
  %s0 = inlined_call_operand.hbm [shape: f32[4,16,128], index: 0, kind: input, shape index: {}]
  %s1 = inlined_call_operand.vmem [shape: f32[1,128], index: 1, kind: input, shape index: {}]
  %s2 = inlined_call_operand.vmem [shape: f32[1,128], index: 2, kind: input, shape index: {}]
  %s3 = inlined_call_operand.hbm [shape: f32[4,16,128], index: 3, kind: output, shape index: {}]
  %s4 = sld [smem:[#allocation0]]
  $region26: #{my_layernorm.1} parent=0
    _
  %s6 = ssub.s32 1, %s4
  %s7 = scalar_select 0, %s6, %s4
  $region1: #{my_layernorm.1} parent=0
    #allocation2 [shape = 'u8[32768]{0}', space=vmem, size = 0x8000, scoped, tag = 'input window, operand 0, single buffered']
    #allocation3 [shape = 's32[1]{0}', space=sflag, size = 0x4, scoped, tag = 'scoped memory for my_layernorm.1']
    #allocation4 [shape = 's32[1]{0}', space=sflag, size = 0x4, scoped, tag = 'scoped memory for my_layernorm.1']
    #allocation5 [shape = 'u8[32768]{0}', space=vmem, size = 0x8000, scoped, tag = 'output window, operand 0, single buffered']
    %8 = vsyncpa [#allocation3], 0
    %9 = vsyncpa [#allocation4], 0
    // Predicated region
    $region2: #{my_layernorm.1} parent=1 // pred_check
      _
    $region3: #{my_layernorm.1} parent=1 // pred_check_branch
      %11 = sbr.rel (0) target = $region5
    $region4: #{my_layernorm.1} parent=1 // pred_region
      %s13 = ssub.s32 1024, 1024
      %14 = vsyncadd [#allocation3], %s13
      %s15 = sshll.u32 [#allocation2], 4
      %s16 = int_to_ptr.vmem [resolvable:$true] %s15
      %21 = dma.hbm_to_vmem [thread:$0]  %s0, 1024, %s16, [#allocation3], 128, 128, 8
    $region5: #{my_layernorm.1} parent=1 // pred_fallthru
      _
    // Predicated region
    $region6: #{my_layernorm.1} parent=1 // pred_check
      _
    $region7: #{my_layernorm.1} parent=1 // pred_check_branch
      %23 = sbr.rel (0) target = $region9
    $region8: #{my_layernorm.1} parent=1 // pred_region
      _
    $region9: #{my_layernorm.1} parent=1 // pred_fallthru
      _
    // Predicated region
    $region10: #{my_layernorm.1} parent=1 // pred_check
      _
    $region11: #{my_layernorm.1} parent=1 // pred_check_branch
      %25 = sbr.rel (0) target = $region13
    $region12: #{my_layernorm.1} parent=1 // pred_region
      _
    $region13: #{my_layernorm.1} parent=1 // pred_fallthru
      _
    // Predicated region
    $region14: #{my_layernorm.1} parent=1 // pred_check
      _
    $region15: #{my_layernorm.1} parent=1 // pred_check_branch
      %27 = sbr.rel (0) target = $region17
    $region16: #{my_layernorm.1} parent=1 // pred_region
      %28 = dma.done [#allocation3], 1024
    $region17: #{my_layernorm.1} parent=1 // pred_fallthru
      _
    %v29 = vld [vmem:[#allocation2] sm:$0xff]
    %v30 = vld [vmem:[#allocation2 + $0x8] sm:$0xff]
    %v31 = vld [vmem:[#allocation2 + $0x10] sm:$0xff]
    %v32 = vld [vmem:[#allocation2 + $0x18] sm:$0xff]
    %v33 = vld [vmem:[#allocation2 + $0x20] sm:$0xff]
    %v34 = vld [vmem:[#allocation2 + $0x28] sm:$0xff]
    %v35 = vld [vmem:[#allocation2 + $0x30] sm:$0xff]
    %v36 = vld [vmem:[#allocation2 + $0x38] sm:$0xff]
    %v37 = vld [vmem:[%s1] sm:$0x1]
    %v38 = vld [vmem:[%s2] sm:$0x1]
    %39 = vadd.xlane.f32.xlu0 %v29
    %v40 = vpop.xlane.xlu0 %39
    %41 = vadd.xlane.f32.xlu0 %v30
    %v42 = vpop.xlane.xlu0 %41
    %43 = vadd.xlane.f32.xlu0 %v31
    %v44 = vpop.xlane.xlu0 %43
    %45 = vadd.xlane.f32.xlu0 %v32
    %v46 = vpop.xlane.xlu0 %45
    %47 = vadd.xlane.f32.xlu0 %v33
    %v48 = vpop.xlane.xlu0 %47
    %49 = vadd.xlane.f32.xlu0 %v34
    %v50 = vpop.xlane.xlu0 %49
    %51 = vadd.xlane.f32.xlu0 %v35
    %v52 = vpop.xlane.xlu0 %51
    %53 = vadd.xlane.f32.xlu0 %v36
    %v54 = vpop.xlane.xlu0 %53
    %v55 = vrcp.pop 128.0
    %v56 = vmul.f32 %v40, %v55
    %v57 = vmul.f32 %v42, %v55
    %v58 = vmul.f32 %v44, %v55
    %v59 = vmul.f32 %v46, %v55
    %v60 = vmul.f32 %v48, %v55
    %v61 = vmul.f32 %v50, %v55
    %v62 = vmul.f32 %v52, %v55
    %v63 = vmul.f32 %v54, %v55
    %v64 = vsub.f32 %v29, %v56
    %v65 = vsub.f32 %v30, %v57
    %v66 = vsub.f32 %v31, %v58
    %v67 = vsub.f32 %v32, %v59
    %v68 = vsub.f32 %v33, %v60
    %v69 = vsub.f32 %v34, %v61
    %v70 = vsub.f32 %v35, %v62
    %v71 = vsub.f32 %v36, %v63
    %v72 = vmul.f32 %v64, %v64
    %v73 = vmul.f32 %v65, %v65
    %v74 = vmul.f32 %v66, %v66
    %v75 = vmul.f32 %v67, %v67
    %v76 = vmul.f32 %v68, %v68
    %v77 = vmul.f32 %v69, %v69
    %v78 = vmul.f32 %v70, %v70
    %v79 = vmul.f32 %v71, %v71
    %80 = vadd.xlane.f32.xlu0 %v72
    %v81 = vpop.xlane.xlu0 %80
    %82 = vadd.xlane.f32.xlu0 %v73
    %v83 = vpop.xlane.xlu0 %82
    %84 = vadd.xlane.f32.xlu0 %v74
    %v85 = vpop.xlane.xlu0 %84
    %86 = vadd.xlane.f32.xlu0 %v75
    %v87 = vpop.xlane.xlu0 %86
    %88 = vadd.xlane.f32.xlu0 %v76
    %v89 = vpop.xlane.xlu0 %88
    %90 = vadd.xlane.f32.xlu0 %v77
    %v91 = vpop.xlane.xlu0 %90
    %92 = vadd.xlane.f32.xlu0 %v78
    %v93 = vpop.xlane.xlu0 %92
    %94 = vadd.xlane.f32.xlu0 %v79
    %v95 = vpop.xlane.xlu0 %94
    %v96 = vmul.f32 %v81, %v55
    %v97 = vmul.f32 %v83, %v55
    %v98 = vmul.f32 %v85, %v55
    %v99 = vmul.f32 %v87, %v55
    %v100 = vmul.f32 %v89, %v55
    %v101 = vmul.f32 %v91, %v55
    %v102 = vmul.f32 %v93, %v55
    %v103 = vmul.f32 %v95, %v55
    %v104 = vadd.f32 %v96, 1e-05
    %v105 = vadd.f32 %v97, 1e-05
    %v106 = vadd.f32 %v98, 1e-05
    %v107 = vadd.f32 %v99, 1e-05
    %v108 = vadd.f32 %v100, 1e-05
    %v109 = vadd.f32 %v101, 1e-05
    %v110 = vadd.f32 %v102, 1e-05
    %v111 = vadd.f32 %v103, 1e-05
    %v112 = vrsqrt.pop %v104
    %v113 = vrsqrt.pop %v105
    %v114 = vrsqrt.pop %v106
    %v115 = vrsqrt.pop %v107
    %v116 = vrsqrt.pop %v108
    %v117 = vrsqrt.pop %v109
    %v118 = vrsqrt.pop %v110
    %v119 = vrsqrt.pop %v111
    %v120 = vmul.f32 %v64, %v112
    %v121 = vmul.f32 %v65, %v113
    %v122 = vmul.f32 %v66, %v114
    %v123 = vmul.f32 %v67, %v115
    %v124 = vmul.f32 %v68, %v116
    %v125 = vmul.f32 %v69, %v117
    %v126 = vmul.f32 %v70, %v118
    %v127 = vmul.f32 %v71, %v119
    %v129 = vlaneseq
    %v130 = vshrl.u32 %v129, 7
    %v131 = vsub.s32 0, %v130
    %v132 = vrot.slane %v37, %v131
    %v134 = vmul.f32 %v120, %v132
    %v135 = vmul.f32 %v121, %v132
    %v136 = vmul.f32 %v122, %v132
    %v137 = vmul.f32 %v123, %v132
    %v138 = vmul.f32 %v124, %v132
    %v139 = vmul.f32 %v125, %v132
    %v140 = vmul.f32 %v126, %v132
    %v141 = vmul.f32 %v127, %v132
    %v143 = vlaneseq
    %v144 = vshrl.u32 %v143, 7
    %v145 = vsub.s32 0, %v144
    %v146 = vrot.slane %v38, %v145
    %v148 = vadd.f32 %v134, %v146
    %v149 = vadd.f32 %v135, %v146
    %v150 = vadd.f32 %v136, %v146
    %v151 = vadd.f32 %v137, %v146
    %v152 = vadd.f32 %v138, %v146
    %v153 = vadd.f32 %v139, %v146
    %v154 = vadd.f32 %v140, %v146
    %v155 = vadd.f32 %v141, %v146
    %v156 = vadd.f32 %v148, %v149
    %v157 = vrot.slane %v156, 4
    %v158 = vadd.f32 %v156, %v157
    %v159 = vrot.slane %v158, 2
    %v160 = vadd.f32 %v158, %v159
    %v161 = vrot.slane %v160, 1
    %v162 = vadd.f32 %v160, %v161
    %v163 = vadd.f32 %v150, %v151
    %v164 = vrot.slane %v163, 4
    %v165 = vadd.f32 %v163, %v164
    %v166 = vrot.slane %v165, 2
    %v167 = vadd.f32 %v165, %v166
    %v168 = vrot.slane %v167, 1
    %v169 = vadd.f32 %v167, %v168
    %v170 = vadd.f32 %v152, %v153
    %v171 = vrot.slane %v170, 4
    %v172 = vadd.f32 %v170, %v171
    %v173 = vrot.slane %v172, 2
    %v174 = vadd.f32 %v172, %v173
    %v175 = vrot.slane %v174, 1
    %v176 = vadd.f32 %v174, %v175
    %v177 = vadd.f32 %v154, %v155
    %v178 = vrot.slane %v177, 4
    %v179 = vadd.f32 %v177, %v178
    %v180 = vrot.slane %v179, 2
    %v181 = vadd.f32 %v179, %v180
    %v182 = vrot.slane %v181, 1
    %v183 = vadd.f32 %v181, %v182
    %v184 = vrcp.pop 16.0
    %v185 = vmul.f32 %v162, %v184
    %v186 = vmul.f32 %v169, %v184
    %v187 = vmul.f32 %v176, %v184
    %v188 = vmul.f32 %v183, %v184
    %v189 = vsub.f32 %v148, %v185
    %v190 = vsub.f32 %v149, %v185
    %v191 = vsub.f32 %v150, %v186
    %v192 = vsub.f32 %v151, %v186
    %v193 = vsub.f32 %v152, %v187
    %v194 = vsub.f32 %v153, %v187
    %v195 = vsub.f32 %v154, %v188
    %v196 = vsub.f32 %v155, %v188
    %197 = vst [vmem:[#allocation5] sm:$0xff] %v189
    %198 = vst [vmem:[#allocation5 + $0x8] sm:$0xff] %v190
    %199 = vst [vmem:[#allocation5 + $0x10] sm:$0xff] %v191
    %200 = vst [vmem:[#allocation5 + $0x18] sm:$0xff] %v192
    %201 = vst [vmem:[#allocation5 + $0x20] sm:$0xff] %v193
    %202 = vst [vmem:[#allocation5 + $0x28] sm:$0xff] %v194
    %203 = vst [vmem:[#allocation5 + $0x30] sm:$0xff] %v195
    %204 = vst [vmem:[#allocation5 + $0x38] sm:$0xff] %v196
    // Predicated region
    $region18: #{my_layernorm.1} parent=1 // pred_check
      _
    $region19: #{my_layernorm.1} parent=1 // pred_check_branch
      %206 = sbr.rel (0) target = $region21
    $region20: #{my_layernorm.1} parent=1 // pred_region
      %s208 = ssub.s32 1024, 1024
      %209 = vsyncadd [#allocation4], %s208
      %s210 = sshll.u32 [#allocation5], 4
      %s211 = int_to_ptr.vmem [resolvable:$true] %s210
      %216 = dma.vmem_to_hbm [thread:$0]  %s211, 1024, %s3, [#allocation4], 128, 128, 8
    $region21: #{my_layernorm.1} parent=1 // pred_fallthru
      _
    // Predicated region
    $region22: #{my_layernorm.1} parent=1 // pred_check
      _
    $region23: #{my_layernorm.1} parent=1 // pred_check_branch
      %218 = sbr.rel (0) target = $region25
    $region24: #{my_layernorm.1} parent=1 // pred_region
      %219 = dma.done [#allocation4], 1024
    $region25: #{my_layernorm.1} parent=1 // pred_fallthru
      _
    %220 = vsyncpa [#allocation3], 1
    %221 = vsyncpa [#allocation4], 1

</llo_original>
